<compile_context>
chip_gen: v7x
topology: tpu7x:2x2x1
jax: 0.10.0
libtpu: 0.0.40
codegen_flags: <defaults>
</compile_context>

<pallas_src>
import jax
import jax.numpy as jnp
from jax import lax
from jax.experimental import pallas as pl
from jax.experimental.pallas import tpu as pltpu


def basic_block_kernel(xv_ref, wt1_ref, wt2_ref, s1_ref, b1_ref, s2_ref, b2_ref,
                       out_ref, mid_ref):
    # xv_ref : (1, H+2, W*C) bf16 -- input with one zero row above/below,
    #                                lane index = w*C + c (channels in lanes)
    # wt*_ref: (3, W*C, W*C) bf16 -- block-Toeplitz 3x3 conv weights, one per ky
    #                                (horizontal padding encoded in the band)
    # s*/b*  : (1, W*C) f32       -- folded BN scale/bias tiled across W
    # out_ref: (1, H, W*C) f32
    # mid_ref: (H+2, W*C) f32     -- vertically padded intermediate (scratch)
    Hp, WC = mid_ref.shape
    H = Hp - 2

    x = xv_ref[0]                                            # (H+2, WC) bf16

    # ---- conv1: 3 lane-dense MXU matmuls (one per ky), f32 accumulation ----
    acc = jnp.dot(x[0:H, :], wt1_ref[0], preferred_element_type=jnp.float32)
    acc = acc + jnp.dot(x[1:H + 1, :], wt1_ref[1],
                        preferred_element_type=jnp.float32)
    acc = acc + jnp.dot(x[2:H + 2, :], wt1_ref[2],
                        preferred_element_type=jnp.float32)

    # ---- bn1 + relu (f32 VPU), fused straight into the padded intermediate ----
    # Only the 1-row top/bottom borders are zeroed; the interior is fully
    # overwritten every step.
    mid_ref[0:1, :] = jnp.zeros((1, WC), mid_ref.dtype)
    mid_ref[Hp - 1:Hp, :] = jnp.zeros((1, WC), mid_ref.dtype)
    mid_ref[1:H + 1, :] = jnp.maximum(acc * s1_ref[...] + b1_ref[...], 0.0)

    # ---- conv2: same structure on the (bf16-cast) intermediate ----
    m = mid_ref[...].astype(jnp.bfloat16)                    # (H+2, WC)
    acc2 = jnp.dot(m[0:H, :], wt2_ref[0], preferred_element_type=jnp.float32)
    acc2 = acc2 + jnp.dot(m[1:H + 1, :], wt2_ref[1],
                          preferred_element_type=jnp.float32)
    acc2 = acc2 + jnp.dot(m[2:H + 2, :], wt2_ref[2],
                          preferred_element_type=jnp.float32)

    # ---- bn2 + residual + relu, lane-dense f32 store ----
    identity = x[1:H + 1, :].astype(jnp.float32)
    out_ref[0] = jnp.maximum(acc2 * s2_ref[...] + b2_ref[...] + identity, 0.0)


def _toeplitz_weights(w_oihw, W):
    """Torch (Cout,Cin,3,3) -> (3, W*C, W*C) bf16 block-Toeplitz matrices.

    For each ky, Wt[ky][w_in*C + ci, w_out*C + co] = w[ky, kx, ci, co] with
    kx = w_in - w_out + 1 (and zero outside kx in {0,1,2}), so a single matmul
    against a (H, W*C) row band performs the full (kx, Cin) contraction
    including horizontal zero-padding.
    """
    w = jnp.transpose(w_oihw, (2, 3, 1, 0))                  # (3,3,Cin,Cout)
    mats = []
    for ky in range(3):
        m = sum(jnp.kron(jnp.eye(W, W, k=1 - kx, dtype=w.dtype), w[ky, kx])
                for kx in range(3))
        mats.append(m)
    return jnp.stack(mats).astype(jnp.bfloat16)              # (3, W*C, W*C)


def basic_block_forward(x_nchw, w1_oihw, w2_oihw,
                        gamma1, beta1, mean1, var1,
                        gamma2, beta2, mean2, var2, eps=1e-5):
    """BasicBlock forward. Input/output in NCHW (PyTorch-style)."""
    N, C, H, W = x_nchw.shape
    WC = W * C

    # Fold BN (eval mode) into per-channel scale/bias, tiled across W so they
    # broadcast against the (H, W*C) lane-flattened activations.
    s1 = gamma1 / jnp.sqrt(var1 + eps)
    b1 = beta1 - mean1 * s1
    s2 = gamma2 / jnp.sqrt(var2 + eps)
    b2 = beta2 - mean2 * s2
    s1t, b1t, s2t, b2t = (jnp.tile(v, W).reshape(1, WC).astype(jnp.float32)
                          for v in (s1, b1, s2, b2))

    # NCHW -> NHWC -> flatten (W, C) into lanes -> pad one zero row top/bottom,
    # cast activations to bf16 (MXU input dtype).
    x = jnp.transpose(x_nchw, (0, 2, 3, 1)).reshape(N, H, WC)
    xv = jnp.pad(x, ((0, 0), (1, 1), (0, 0))).astype(jnp.bfloat16)  # (N,H+2,WC)

    wt1 = _toeplitz_weights(w1_oihw, W)
    wt2 = _toeplitz_weights(w2_oihw, W)

    grid_spec = pltpu.PrefetchScalarGridSpec(
        num_scalar_prefetch=0,
        grid=(N,),
        in_specs=[
            pl.BlockSpec((1, H + 2, WC), lambda n: (n, 0, 0)),
            pl.BlockSpec((3, WC, WC), lambda n: (0, 0, 0)),
            pl.BlockSpec((3, WC, WC), lambda n: (0, 0, 0)),
            pl.BlockSpec((1, WC), lambda n: (0, 0)),
            pl.BlockSpec((1, WC), lambda n: (0, 0)),
            pl.BlockSpec((1, WC), lambda n: (0, 0)),
            pl.BlockSpec((1, WC), lambda n: (0, 0)),
        ],
        out_specs=pl.BlockSpec((1, H, WC), lambda n: (n, 0, 0)),
        scratch_shapes=[pltpu.VMEM((H + 2, WC), jnp.float32)],
    )

    cost = pl.CostEstimate(
        flops=int(N * 2 * 3 * 2 * H * WC * WC),              # 2 convs * 3 matmuls
        transcendentals=0,
        bytes_accessed=int(xv.size * 2 + wt1.size * 2 + wt2.size * 2
                           + 4 * WC * 4 + N * H * WC * 4),
    )

    out = pl.pallas_call(
        basic_block_kernel,
        out_shape=jax.ShapeDtypeStruct((N, H, WC), jnp.float32),
        grid_spec=grid_spec,
        compiler_params=pltpu.CompilerParams(
            dimension_semantics=("parallel",)),
        cost_estimate=cost,
    )(xv, wt1, wt2, s1t, b1t, s2t, b2t)

    # (N, H, W*C) -> (N, H, W, C) -> NCHW
    return jnp.transpose(out.reshape(N, H, W, C), (0, 3, 1, 2))


def basic_block_reference(x_nchw, w1_oihw, w2_oihw,
                          gamma1, beta1, mean1, var1,
                          gamma2, beta2, mean2, var2, eps=1e-5):
    """Pure-JAX f32 reference (NHWC conv) for correctness checking."""
    x = jnp.transpose(x_nchw, (0, 2, 3, 1))
    w1 = jnp.transpose(w1_oihw, (2, 3, 1, 0))
    w2 = jnp.transpose(w2_oihw, (2, 3, 1, 0))
    dn = lax.conv_dimension_numbers(x.shape, w1.shape, ("NHWC", "HWIO", "NHWC"))

    def bn(y, g, b, m, v):
        return (y - m) / jnp.sqrt(v + eps) * g + b

    out = lax.conv_general_dilated(x, w1, (1, 1), ((1, 1), (1, 1)),
                                   dimension_numbers=dn)
    out = jax.nn.relu(bn(out, gamma1, beta1, mean1, var1))
    out = lax.conv_general_dilated(out, w2, (1, 1), ((1, 1), (1, 1)),
                                   dimension_numbers=dn)
    out = bn(out, gamma2, beta2, mean2, var2) + x
    out = jax.nn.relu(out)
    return jnp.transpose(out, (0, 3, 1, 2))


if __name__ == "__main__":
    N, C, H, W = 2, 4, 16, 16  # in_ch == out_ch, stride=1, downsample=None

    key = jax.random.PRNGKey(0)
    k = jax.random.split(key, 8)
    x = jax.random.normal(k[0], (N, C, H, W), dtype=jnp.float32)
    w1 = jax.random.normal(k[1], (C, C, 3, 3), dtype=jnp.float32) * 0.1
    w2 = jax.random.normal(k[2], (C, C, 3, 3), dtype=jnp.float32) * 0.1
    gamma1 = 1.0 + 0.1 * jax.random.normal(k[3], (C,), dtype=jnp.float32)
    beta1 = 0.1 * jax.random.normal(k[4], (C,), dtype=jnp.float32)
    gamma2 = 1.0 + 0.1 * jax.random.normal(k[5], (C,), dtype=jnp.float32)
    beta2 = 0.1 * jax.random.normal(k[6], (C,), dtype=jnp.float32)
    mean1 = 0.05 * jnp.arange(C, dtype=jnp.float32)
    var1 = 1.0 + 0.1 * jnp.arange(C, dtype=jnp.float32)
    mean2 = -0.05 * jnp.arange(C, dtype=jnp.float32)
    var2 = 1.0 + 0.05 * jnp.arange(C, dtype=jnp.float32)

    out = basic_block_forward(x, w1, w2, gamma1, beta1, mean1, var1,
                              gamma2, beta2, mean2, var2)
    out = jax.block_until_ready(out)

    ref = basic_block_reference(x, w1, w2, gamma1, beta1, mean1, var1,
                                gamma2, beta2, mean2, var2)
    assert out.shape == (N, C, H, W)
    # bf16 activations/weights with f32 accumulation -> relaxed tolerance.
    max_err = float(jnp.max(jnp.abs(out - ref)))
    assert jnp.allclose(out, ref, atol=5e-2, rtol=5e-2), max_err
    print("KERNEL_OK")
</pallas_src>

<mosaic_0001>
module attributes {stable_mosaic.version = 11 : i64} {
  func.func @basic_block_kernel(%arg0: i32, %arg1: memref<1x18x64xbf16, #tpu.memory_space<vmem>>, %arg2: memref<3x64x64xbf16, #tpu.memory_space<vmem>>, %arg3: memref<3x64x64xbf16, #tpu.memory_space<vmem>>, %arg4: memref<1x64xf32, #tpu.memory_space<vmem>>, %arg5: memref<1x64xf32, #tpu.memory_space<vmem>>, %arg6: memref<1x64xf32, #tpu.memory_space<vmem>>, %arg7: memref<1x64xf32, #tpu.memory_space<vmem>>, %arg8: memref<1x16x64xf32, #tpu.memory_space<vmem>>, %arg9: memref<18x64xf32, #tpu.memory_space<vmem>>) attributes {dimension_semantics = [#tpu.dimension_semantics<parallel>], iteration_bounds = array<i64: 2>, scalar_prefetch = 0 : i64, scratch_operands = 1 : i64, tpu.core_type = #tpu.core_type<tc>, window_params = [{transform_indices = @transform_0, window_bounds = array<i64: 1, 18, 64>}, {pipeline_mode = #tpu.pipeline_mode<synchronous>, transform_indices = @transform_1, window_bounds = array<i64: 3, 64, 64>}, {pipeline_mode = #tpu.pipeline_mode<synchronous>, transform_indices = @transform_2, window_bounds = array<i64: 3, 64, 64>}, {pipeline_mode = #tpu.pipeline_mode<synchronous>, transform_indices = @transform_3, window_bounds = array<i64: 1, 64>}, {pipeline_mode = #tpu.pipeline_mode<synchronous>, transform_indices = @transform_4, window_bounds = array<i64: 1, 64>}, {pipeline_mode = #tpu.pipeline_mode<synchronous>, transform_indices = @transform_5, window_bounds = array<i64: 1, 64>}, {pipeline_mode = #tpu.pipeline_mode<synchronous>, transform_indices = @transform_6, window_bounds = array<i64: 1, 64>}, {transform_indices = @transform_7, window_bounds = array<i64: 1, 16, 64>}]} {
    %c0 = arith.constant 0 : index
    %c0_0 = arith.constant 0 : index
    %c0_1 = arith.constant 0 : index
    %0 = vector.load %arg1[%c0, %c0_0, %c0_1] : memref<1x18x64xbf16, #tpu.memory_space<vmem>>, vector<1x18x64xbf16>
    %1 = vector.shape_cast %0 : vector<1x18x64xbf16> to vector<18x64xbf16>
    %2 = vector.extract_strided_slice %1 {offsets = [0, 0], sizes = [16, 64], strides = [1, 1]} : vector<18x64xbf16> to vector<16x64xbf16>
    %c0_2 = arith.constant 0 : index
    %c0_3 = arith.constant 0 : index
    %c0_4 = arith.constant 0 : index
    %3 = vector.load %arg2[%c0_2, %c0_3, %c0_4] : memref<3x64x64xbf16, #tpu.memory_space<vmem>>, vector<1x64x64xbf16>
    %4 = vector.shape_cast %3 : vector<1x64x64xbf16> to vector<64x64xbf16>
    %cst = arith.constant dense<0.000000e+00> : vector<16x64xf32>
    %5 = tpu.matmul %2, %4, %cst {dimension_numbers = #tpu.dot_dimension_numbers<[1], [0], [0], [1], [0, 0, 1, 1], [], []>} : vector<16x64xbf16>, vector<64x64xbf16>, vector<16x64xf32> -> vector<16x64xf32>
    %6 = vector.extract_strided_slice %1 {offsets = [1, 0], sizes = [16, 64], strides = [1, 1]} : vector<18x64xbf16> to vector<16x64xbf16>
    %c1 = arith.constant 1 : index
    %c0_5 = arith.constant 0 : index
    %c0_6 = arith.constant 0 : index
    %7 = vector.load %arg2[%c1, %c0_5, %c0_6] : memref<3x64x64xbf16, #tpu.memory_space<vmem>>, vector<1x64x64xbf16>
    %8 = vector.shape_cast %7 : vector<1x64x64xbf16> to vector<64x64xbf16>
    %cst_7 = arith.constant dense<0.000000e+00> : vector<16x64xf32>
    %9 = tpu.matmul %6, %8, %cst_7 {dimension_numbers = #tpu.dot_dimension_numbers<[1], [0], [0], [1], [0, 0, 1, 1], [], []>} : vector<16x64xbf16>, vector<64x64xbf16>, vector<16x64xf32> -> vector<16x64xf32>
    %10 = arith.addf %5, %9 : vector<16x64xf32>
    %11 = vector.extract_strided_slice %1 {offsets = [2, 0], sizes = [16, 64], strides = [1, 1]} : vector<18x64xbf16> to vector<16x64xbf16>
    %c2 = arith.constant 2 : index
    %c0_8 = arith.constant 0 : index
    %c0_9 = arith.constant 0 : index
    %12 = vector.load %arg2[%c2, %c0_8, %c0_9] : memref<3x64x64xbf16, #tpu.memory_space<vmem>>, vector<1x64x64xbf16>
    %13 = vector.shape_cast %12 : vector<1x64x64xbf16> to vector<64x64xbf16>
    %cst_10 = arith.constant dense<0.000000e+00> : vector<16x64xf32>
    %14 = tpu.matmul %11, %13, %cst_10 {dimension_numbers = #tpu.dot_dimension_numbers<[1], [0], [0], [1], [0, 0, 1, 1], [], []>} : vector<16x64xbf16>, vector<64x64xbf16>, vector<16x64xf32> -> vector<16x64xf32>
    %15 = arith.addf %10, %14 : vector<16x64xf32>
    %cst_11 = arith.constant 0.000000e+00 : f32
    %16 = vector.broadcast %cst_11 : f32 to vector<1x64xf32>
    %c0_12 = arith.constant 0 : index
    %c0_13 = arith.constant 0 : index
    %17 = vector.load %arg9[%c0_12, %c0_13] : memref<18x64xf32, #tpu.memory_space<vmem>>, vector<1x64xf32>
    tpu.vector_store %arg9[%c0_12, %c0_13], %16 {strides = array<i32>} : memref<18x64xf32, #tpu.memory_space<vmem>>, vector<1x64xf32>,
    %cst_14 = arith.constant 0.000000e+00 : f32
    %18 = vector.broadcast %cst_14 : f32 to vector<1x64xf32>
    %c17 = arith.constant 17 : index
    %c0_15 = arith.constant 0 : index
    %19 = vector.load %arg9[%c17, %c0_15] : memref<18x64xf32, #tpu.memory_space<vmem>>, vector<1x64xf32>
    tpu.vector_store %arg9[%c17, %c0_15], %18 {strides = array<i32>} : memref<18x64xf32, #tpu.memory_space<vmem>>, vector<1x64xf32>,
    %c0_16 = arith.constant 0 : index
    %c0_17 = arith.constant 0 : index
    %20 = vector.load %arg4[%c0_16, %c0_17] : memref<1x64xf32, #tpu.memory_space<vmem>>, vector<1x64xf32>
    %21 = vector.broadcast %20 : vector<1x64xf32> to vector<16x64xf32>
    %22 = arith.mulf %15, %21 : vector<16x64xf32>
    %c0_18 = arith.constant 0 : index
    %c0_19 = arith.constant 0 : index
    %23 = vector.load %arg5[%c0_18, %c0_19] : memref<1x64xf32, #tpu.memory_space<vmem>>, vector<1x64xf32>
    %24 = vector.broadcast %23 : vector<1x64xf32> to vector<16x64xf32>
    %25 = arith.addf %22, %24 : vector<16x64xf32>
    %cst_20 = arith.constant 0.000000e+00 : f32
    %26 = vector.broadcast %cst_20 : f32 to vector<16x64xf32>
    %27 = arith.maximumf %25, %26 : vector<16x64xf32>
    %c1_21 = arith.constant 1 : index
    %c0_22 = arith.constant 0 : index
    %28 = vector.load %arg9[%c1_21, %c0_22] : memref<18x64xf32, #tpu.memory_space<vmem>>, vector<16x64xf32>
    tpu.vector_store %arg9[%c1_21, %c0_22], %27 {strides = array<i32>} : memref<18x64xf32, #tpu.memory_space<vmem>>, vector<16x64xf32>,
    %c0_23 = arith.constant 0 : index
    %c0_24 = arith.constant 0 : index
    %29 = vector.load %arg9[%c0_23, %c0_24] : memref<18x64xf32, #tpu.memory_space<vmem>>, vector<18x64xf32>
    %30 = arith.truncf %29 : vector<18x64xf32> to vector<18x64xbf16>
    %31 = vector.extract_strided_slice %30 {offsets = [0, 0], sizes = [16, 64], strides = [1, 1]} : vector<18x64xbf16> to vector<16x64xbf16>
    %c0_25 = arith.constant 0 : index
    %c0_26 = arith.constant 0 : index
    %c0_27 = arith.constant 0 : index
    %32 = vector.load %arg3[%c0_25, %c0_26, %c0_27] : memref<3x64x64xbf16, #tpu.memory_space<vmem>>, vector<1x64x64xbf16>
    %33 = vector.shape_cast %32 : vector<1x64x64xbf16> to vector<64x64xbf16>
    %cst_28 = arith.constant dense<0.000000e+00> : vector<16x64xf32>
    %34 = tpu.matmul %31, %33, %cst_28 {dimension_numbers = #tpu.dot_dimension_numbers<[1], [0], [0], [1], [0, 0, 1, 1], [], []>} : vector<16x64xbf16>, vector<64x64xbf16>, vector<16x64xf32> -> vector<16x64xf32>
    %35 = vector.extract_strided_slice %30 {offsets = [1, 0], sizes = [16, 64], strides = [1, 1]} : vector<18x64xbf16> to vector<16x64xbf16>
    %c1_29 = arith.constant 1 : index
    %c0_30 = arith.constant 0 : index
    %c0_31 = arith.constant 0 : index
    %36 = vector.load %arg3[%c1_29, %c0_30, %c0_31] : memref<3x64x64xbf16, #tpu.memory_space<vmem>>, vector<1x64x64xbf16>
    %37 = vector.shape_cast %36 : vector<1x64x64xbf16> to vector<64x64xbf16>
    %cst_32 = arith.constant dense<0.000000e+00> : vector<16x64xf32>
    %38 = tpu.matmul %35, %37, %cst_32 {dimension_numbers = #tpu.dot_dimension_numbers<[1], [0], [0], [1], [0, 0, 1, 1], [], []>} : vector<16x64xbf16>, vector<64x64xbf16>, vector<16x64xf32> -> vector<16x64xf32>
    %39 = arith.addf %34, %38 : vector<16x64xf32>
    %40 = vector.extract_strided_slice %30 {offsets = [2, 0], sizes = [16, 64], strides = [1, 1]} : vector<18x64xbf16> to vector<16x64xbf16>
    %c2_33 = arith.constant 2 : index
    %c0_34 = arith.constant 0 : index
    %c0_35 = arith.constant 0 : index
    %41 = vector.load %arg3[%c2_33, %c0_34, %c0_35] : memref<3x64x64xbf16, #tpu.memory_space<vmem>>, vector<1x64x64xbf16>
    %42 = vector.shape_cast %41 : vector<1x64x64xbf16> to vector<64x64xbf16>
    %cst_36 = arith.constant dense<0.000000e+00> : vector<16x64xf32>
    %43 = tpu.matmul %40, %42, %cst_36 {dimension_numbers = #tpu.dot_dimension_numbers<[1], [0], [0], [1], [0, 0, 1, 1], [], []>} : vector<16x64xbf16>, vector<64x64xbf16>, vector<16x64xf32> -> vector<16x64xf32>
    %44 = arith.addf %39, %43 : vector<16x64xf32>
    %45 = vector.extract_strided_slice %1 {offsets = [1, 0], sizes = [16, 64], strides = [1, 1]} : vector<18x64xbf16> to vector<16x64xbf16>
    %46 = arith.extf %45 : vector<16x64xbf16> to vector<16x64xf32>
    %c0_37 = arith.constant 0 : index
    %c0_38 = arith.constant 0 : index
    %47 = vector.load %arg6[%c0_37, %c0_38] : memref<1x64xf32, #tpu.memory_space<vmem>>, vector<1x64xf32>
    %48 = vector.broadcast %47 : vector<1x64xf32> to vector<16x64xf32>
    %49 = arith.mulf %44, %48 : vector<16x64xf32>
    %c0_39 = arith.constant 0 : index
    %c0_40 = arith.constant 0 : index
    %50 = vector.load %arg7[%c0_39, %c0_40] : memref<1x64xf32, #tpu.memory_space<vmem>>, vector<1x64xf32>
    %51 = vector.broadcast %50 : vector<1x64xf32> to vector<16x64xf32>
    %52 = arith.addf %49, %51 : vector<16x64xf32>
    %53 = arith.addf %52, %46 : vector<16x64xf32>
    %cst_41 = arith.constant 0.000000e+00 : f32
    %54 = vector.broadcast %cst_41 : f32 to vector<16x64xf32>
    %55 = arith.maximumf %53, %54 : vector<16x64xf32>
    %c0_42 = arith.constant 0 : index
    %c0_43 = arith.constant 0 : index
    %c0_44 = arith.constant 0 : index
    %56 = vector.load %arg8[%c0_42, %c0_43, %c0_44] : memref<1x16x64xf32, #tpu.memory_space<vmem>>, vector<1x16x64xf32>
    %57 = vector.shape_cast %56 : vector<1x16x64xf32> to vector<16x64xf32>
    %58 = vector.shape_cast %55 : vector<16x64xf32> to vector<1x16x64xf32>
    tpu.vector_store %arg8[%c0_42, %c0_43, %c0_44], %58 {strides = array<i32>} : memref<1x16x64xf32, #tpu.memory_space<vmem>>, vector<1x16x64xf32>,
    return
  }
  func.func @transform_0(%arg0: i32) -> (i32, i32, i32) {
    %c0_i32 = arith.constant 0 : i32
    %c0_i32_0 = arith.constant 0 : i32
    %c0_i32_1 = arith.constant 0 : i32
    return %arg0, %c0_i32, %c0_i32_0 : i32, i32, i32
  }
  func.func @transform_1(%arg0: i32) -> (i32, i32, i32) {
    %c0_i32 = arith.constant 0 : i32
    %c0_i32_0 = arith.constant 0 : i32
    %c0_i32_1 = arith.constant 0 : i32
    %c0_i32_2 = arith.constant 0 : i32
    return %c0_i32, %c0_i32_0, %c0_i32_1 : i32, i32, i32
  }
  func.func @transform_2(%arg0: i32) -> (i32, i32, i32) {
    %c0_i32 = arith.constant 0 : i32
    %c0_i32_0 = arith.constant 0 : i32
    %c0_i32_1 = arith.constant 0 : i32
    %c0_i32_2 = arith.constant 0 : i32
    return %c0_i32, %c0_i32_0, %c0_i32_1 : i32, i32, i32
  }
  func.func @transform_3(%arg0: i32) -> (i32, i32) {
    %c0_i32 = arith.constant 0 : i32
    %c0_i32_0 = arith.constant 0 : i32
    %c0_i32_1 = arith.constant 0 : i32
    return %c0_i32, %c0_i32_0 : i32, i32
  }
  func.func @transform_4(%arg0: i32) -> (i32, i32) {
    %c0_i32 = arith.constant 0 : i32
    %c0_i32_0 = arith.constant 0 : i32
    %c0_i32_1 = arith.constant 0 : i32
    return %c0_i32, %c0_i32_0 : i32, i32
  }
  func.func @transform_5(%arg0: i32) -> (i32, i32) {
    %c0_i32 = arith.constant 0 : i32
    %c0_i32_0 = arith.constant 0 : i32
    %c0_i32_1 = arith.constant 0 : i32
    return %c0_i32, %c0_i32_0 : i32, i32
  }
  func.func @transform_6(%arg0: i32) -> (i32, i32) {
    %c0_i32 = arith.constant 0 : i32
    %c0_i32_0 = arith.constant 0 : i32
    %c0_i32_1 = arith.constant 0 : i32
    return %c0_i32, %c0_i32_0 : i32, i32
  }
  func.func @transform_7(%arg0: i32) -> (i32, i32, i32) {
    %c0_i32 = arith.constant 0 : i32
    %c0_i32_0 = arith.constant 0 : i32
    %c0_i32_1 = arith.constant 0 : i32
    return %arg0, %c0_i32, %c0_i32_0 : i32, i32, i32
  }
}

</mosaic_0001>

<llo_original>
// kernel: tpu_custom_call.1
$region0: #{tpu_custom_call.1}
  #allocation0 [shape = 'u32[]', space=smem, size = 0x4, offset = 0x4, fixed_abs, tag = 'smem constant byte address 0x4 - core index']
  #allocation1 [shape = 'u32[144,128]{1,0:T(1,128)}', space=vmem, size = 0x12000, scoped, tag = 'internal scratch']
  #allocation2 [shape = 'f32[18,64]{1,0:T(8,128)}', space=vmem, size = 0x3000, scoped, tag = 'scratch operand']
  %s0 = inlined_call_operand.vmem [shape: bf16[2,18,64], index: 0, kind: input, shape index: {}]
  %s1 = inlined_call_operand.hbm [shape: bf16[3,64,64], index: 1, kind: input, shape index: {}]
  %s2 = inlined_call_operand.hbm [shape: bf16[3,64,64], index: 2, kind: input, shape index: {}]
  %s3 = inlined_call_operand.vmem [shape: f32[1,64], index: 3, kind: input, shape index: {}]
  %s4 = inlined_call_operand.vmem [shape: f32[1,64], index: 4, kind: input, shape index: {}]
  %s5 = inlined_call_operand.vmem [shape: f32[1,64], index: 5, kind: input, shape index: {}]
  %s6 = inlined_call_operand.vmem [shape: f32[1,64], index: 6, kind: input, shape index: {}]
  %s7 = inlined_call_operand.hbm [shape: f32[2,16,64], index: 7, kind: output, shape index: {}]
  %s8 = sld [smem:[#allocation0]]
  $region69: #{tpu_custom_call.1} parent=0
    _
  %s10 = ssub.s32 1, %s8
  %s11 = scalar_select 0, %s10, %s8
  $region1: #{tpu_custom_call.1} parent=0
    #allocation3 [shape = 'u8[49152]{0}', space=vmem, size = 0xc000, scoped, tag = 'input window, operand 1, single buffered']
    #allocation4 [shape = 's32[2]{0}', space=sflag, size = 0x8, scoped, tag = 'scoped memory for tpu_custom_call.1']
    #allocation5 [shape = 's32[2]{0}', space=sflag, size = 0x8, scoped, tag = 'scoped memory for tpu_custom_call.1']
    #allocation6 [shape = 'u8[49152]{0}', space=vmem, size = 0xc000, scoped, tag = 'input window, operand 2, single buffered']
    #allocation7 [shape = 's32[1]{0}', space=sflag, size = 0x4, scoped, tag = 'scoped memory for tpu_custom_call.1']
    #allocation8 [shape = 'u8[16384]{0}', space=vmem, size = 0x4000, scoped, tag = 'output window, operand 0']
    %12 = vsyncpa [#allocation4], 0
    %13 = vsyncpa [#allocation7], 0
    %14 = vsyncpa [#allocation5], 0
    %s15 = scalar_lea.sflag [#allocation5], 1
    %16 = vsyncpa %s15, 0
    loop: start=0, step=1, limit=4
    $region2: #{tpu_custom_call.1} parent=1 // loop_pre_header
      _
    $region3: #{tpu_custom_call.1} parent=1 // loop_header
      %s18 = sphi 0, %s22
      %p19 = scmp.ge.s32.totalorder %s18, 4
      %s28 = sphi 0, %s30
      %s31 = sphi 0, %s28
      %s32 = sphi 0, %s31
      %s48 = sphi 0, %s32
      %s52 = sphi 0, %s52
      %s54 = sphi 0, %s52
      %s55 = sphi 0, %s54
      %s69 = sphi 0, %s55
      %s73 = sphi 0, %s73
      %s75 = sphi 0, %s73
      %s76 = sphi 0, %s75
      %s90 = sphi 0, %s76
      %s94 = sphi 0, %s94
      %s96 = sphi 0, %s94
      %s97 = sphi 0, %s96
      %s111 = sphi 0, %s97
      %s115 = sphi 0, %s115
      %s117 = sphi 0, %s115
      %s118 = sphi 0, %s117
      %s132 = sphi 0, %s118
      %s136 = sphi 0, %s136
      %s138 = sphi 0, %s136
      %s139 = sphi 0, %s138
      %s153 = sphi 0, %s139
      %s157 = sphi 0, %s157
      %s159 = sphi 0, %s157
      %s160 = sphi 0, %s159
      %s174 = sphi 0, %s160
      %s180 = sphi 0, %s182
      %s183 = sphi 0, %s180
      %s184 = sphi 0, %s183
      %s200 = sphi 0, %s184
    $region4: #{tpu_custom_call.1} parent=1 // loop_header_branch
      %21 = sbr.rel (%p19) target = $region8
    $region5: #{tpu_custom_call.1} parent=1 // loop_body
      %s23 = ssub.s32 %s18, 1
      %s24 = ssub.s32 %s18, 2
      %s25 = sadd.s32 %s18, 1
      %s26 = ssub.s32 %s18, %s25
      %p27 = scmp.eq.s32.totalorder %s26, 0
      %s29 = sadd.s32 %s28, 1
      %s30 = scalar_select %p27, %s28, %s29
      %p33 = pneg %p27
      %p34 = scmp.eq.s32.totalorder %s18, 1
      %p35 = por %p33, %p34
      %p36 = scmp.ne.s32.totalorder %s28, %s31
      %p37 = scmp.eq.s32.totalorder %s18, 0
      %p38 = por %p36, %p37
      %p39 = scmp.ne.s32.totalorder %s28, %s31
      %p40 = scmp.eq.s32.totalorder %s23, 1
      %p41 = por %p39, %p40
      %p42 = scmp.ne.s32.totalorder %s31, %s32
      %p43 = scmp.eq.s32.totalorder %s23, 0
      %p44 = por %p42, %p43
      %p45 = scmp.ne.s32.totalorder %s31, %s32
      %p46 = scmp.eq.s32.totalorder %s24, 1
      %p47 = por %p45, %p46
      %p49 = scmp.ne.s32.totalorder %s32, %s48
      %p50 = scmp.eq.s32.totalorder %s24, 0
      %p51 = por %p49, %p50
      %s53 = sadd.s32 %s52, 1
      %p56 = scmp.eq.s32.totalorder %s18, 1
      %p57 = scmp.ne.s32.totalorder %s52, %s54
      %p58 = scmp.eq.s32.totalorder %s18, 0
      %p59 = por %p57, %p58
      %p60 = scmp.ne.s32.totalorder %s52, %s54
      %p61 = scmp.eq.s32.totalorder %s23, 1
      %p62 = por %p60, %p61
      %p63 = scmp.ne.s32.totalorder %s54, %s55
      %p64 = scmp.eq.s32.totalorder %s23, 0
      %p65 = por %p63, %p64
      %p66 = scmp.ne.s32.totalorder %s54, %s55
      %p67 = scmp.eq.s32.totalorder %s24, 1
      %p68 = por %p66, %p67
      %p70 = scmp.ne.s32.totalorder %s55, %s69
      %p71 = scmp.eq.s32.totalorder %s24, 0
      %p72 = por %p70, %p71
      %s74 = sadd.s32 %s73, 1
      %p77 = scmp.eq.s32.totalorder %s18, 1
      %p78 = scmp.ne.s32.totalorder %s73, %s75
      %p79 = scmp.eq.s32.totalorder %s18, 0
      %p80 = por %p78, %p79
      %p81 = scmp.ne.s32.totalorder %s73, %s75
      %p82 = scmp.eq.s32.totalorder %s23, 1
      %p83 = por %p81, %p82
      %p84 = scmp.ne.s32.totalorder %s75, %s76
      %p85 = scmp.eq.s32.totalorder %s23, 0
      %p86 = por %p84, %p85
      %p87 = scmp.ne.s32.totalorder %s75, %s76
      %p88 = scmp.eq.s32.totalorder %s24, 1
      %p89 = por %p87, %p88
      %p91 = scmp.ne.s32.totalorder %s76, %s90
      %p92 = scmp.eq.s32.totalorder %s24, 0
      %p93 = por %p91, %p92
      %s95 = sadd.s32 %s94, 1
      %p98 = scmp.eq.s32.totalorder %s18, 1
      %p99 = scmp.ne.s32.totalorder %s94, %s96
      %p100 = scmp.eq.s32.totalorder %s18, 0
      %p101 = por %p99, %p100
      %p102 = scmp.ne.s32.totalorder %s94, %s96
      %p103 = scmp.eq.s32.totalorder %s23, 1
      %p104 = por %p102, %p103
      %p105 = scmp.ne.s32.totalorder %s96, %s97
      %p106 = scmp.eq.s32.totalorder %s23, 0
      %p107 = por %p105, %p106
      %p108 = scmp.ne.s32.totalorder %s96, %s97
      %p109 = scmp.eq.s32.totalorder %s24, 1
      %p110 = por %p108, %p109
      %p112 = scmp.ne.s32.totalorder %s97, %s111
      %p113 = scmp.eq.s32.totalorder %s24, 0
      %p114 = por %p112, %p113
      %s116 = sadd.s32 %s115, 1
      %p119 = scmp.eq.s32.totalorder %s18, 1
      %p120 = scmp.ne.s32.totalorder %s115, %s117
      %p121 = scmp.eq.s32.totalorder %s18, 0
      %p122 = por %p120, %p121
      %p123 = scmp.ne.s32.totalorder %s115, %s117
      %p124 = scmp.eq.s32.totalorder %s23, 1
      %p125 = por %p123, %p124
      %p126 = scmp.ne.s32.totalorder %s117, %s118
      %p127 = scmp.eq.s32.totalorder %s23, 0
      %p128 = por %p126, %p127
      %p129 = scmp.ne.s32.totalorder %s117, %s118
      %p130 = scmp.eq.s32.totalorder %s24, 1
      %p131 = por %p129, %p130
      %p133 = scmp.ne.s32.totalorder %s118, %s132
      %p134 = scmp.eq.s32.totalorder %s24, 0
      %p135 = por %p133, %p134
      %s137 = sadd.s32 %s136, 1
      %p140 = scmp.eq.s32.totalorder %s18, 1
      %p141 = scmp.ne.s32.totalorder %s136, %s138
      %p142 = scmp.eq.s32.totalorder %s18, 0
      %p143 = por %p141, %p142
      %p144 = scmp.ne.s32.totalorder %s136, %s138
      %p145 = scmp.eq.s32.totalorder %s23, 1
      %p146 = por %p144, %p145
      %p147 = scmp.ne.s32.totalorder %s138, %s139
      %p148 = scmp.eq.s32.totalorder %s23, 0
      %p149 = por %p147, %p148
      %p150 = scmp.ne.s32.totalorder %s138, %s139
      %p151 = scmp.eq.s32.totalorder %s24, 1
      %p152 = por %p150, %p151
      %p154 = scmp.ne.s32.totalorder %s139, %s153
      %p155 = scmp.eq.s32.totalorder %s24, 0
      %p156 = por %p154, %p155
      %s158 = sadd.s32 %s157, 1
      %p161 = scmp.eq.s32.totalorder %s18, 1
      %p162 = scmp.ne.s32.totalorder %s157, %s159
      %p163 = scmp.eq.s32.totalorder %s18, 0
      %p164 = por %p162, %p163
      %p165 = scmp.ne.s32.totalorder %s157, %s159
      %p166 = scmp.eq.s32.totalorder %s23, 1
      %p167 = por %p165, %p166
      %p168 = scmp.ne.s32.totalorder %s159, %s160
      %p169 = scmp.eq.s32.totalorder %s23, 0
      %p170 = por %p168, %p169
      %p171 = scmp.ne.s32.totalorder %s159, %s160
      %p172 = scmp.eq.s32.totalorder %s24, 1
      %p173 = por %p171, %p172
      %p175 = scmp.ne.s32.totalorder %s160, %s174
      %p176 = scmp.eq.s32.totalorder %s24, 0
      %p177 = por %p175, %p176
      %s178 = ssub.s32 %s18, %s25
      %p179 = scmp.eq.s32.totalorder %s178, 0
      %s181 = sadd.s32 %s180, 1
      %s182 = scalar_select %p179, %s180, %s181
      %p185 = pneg %p179
      %p186 = scmp.eq.s32.totalorder %s18, 1
      %p187 = por %p185, %p186
      %p188 = scmp.ne.s32.totalorder %s180, %s183
      %p189 = scmp.eq.s32.totalorder %s18, 0
      %p190 = por %p188, %p189
      %p191 = scmp.ne.s32.totalorder %s180, %s183
      %p192 = scmp.eq.s32.totalorder %s23, 1
      %p193 = por %p191, %p192
      %p194 = scmp.ne.s32.totalorder %s183, %s184
      %p195 = scmp.eq.s32.totalorder %s23, 0
      %p196 = por %p194, %p195
      %p197 = scmp.ne.s32.totalorder %s183, %s184
      %p198 = scmp.eq.s32.totalorder %s24, 1
      %p199 = por %p197, %p198
      %p201 = scmp.ne.s32.totalorder %s184, %s200
      %p202 = scmp.eq.s32.totalorder %s24, 0
      %p203 = por %p201, %p202
      %p204 = scmp.le.s32.totalorder 1, %s18
      %p205 = scmp.lt.s32.totalorder %s18, 3
      %p206 = pnand %p204, %p205
      %p207 = pneg %p206
      // Predicated region
      $region9: #{tpu_custom_call.1} parent=5 // pred_check
        _
      $region10: #{tpu_custom_call.1} parent=5 // pred_check_branch
        %209 = sbr.rel (%p206) target = $region12
      $region11: #{tpu_custom_call.1} parent=5 // pred_region
        %s210 = ssub.s32 %s18, 1
        // Predicated region
        $region13: #{tpu_custom_call.1} parent=11 // pred_check
          %p211 = pneg %p65
        $region14: #{tpu_custom_call.1} parent=11 // pred_check_branch
          %213 = sbr.rel (%p211) target = $region16
        $region15: #{tpu_custom_call.1} parent=11 // pred_region
          %s215 = ssub.s32 1536, 1536
          %216 = vsyncadd [#allocation4], %s215
          %s217 = sshll.u32 [#allocation3], 4
          %s218 = int_to_ptr.vmem [resolvable:$true] %s217
          %223 = dma.hbm_to_vmem [thread:$0]  %s1, 1536, %s218, [#allocation4], 64, 64, 4
        $region16: #{tpu_custom_call.1} parent=11 // pred_fallthru
          _
        // Predicated region
        $region17: #{tpu_custom_call.1} parent=11 // pred_check
          %p224 = pneg %p86
        $region18: #{tpu_custom_call.1} parent=11 // pred_check_branch
          %226 = sbr.rel (%p224) target = $region20
        $region19: #{tpu_custom_call.1} parent=11 // pred_region
          %s228 = ssub.s32 1536, 1536
          %229 = vsyncadd [#allocation7], %s228
          %s230 = sshll.u32 [#allocation6], 4
          %s231 = int_to_ptr.vmem [resolvable:$true] %s230
          %236 = dma.hbm_to_vmem [thread:$0]  %s2, 1536, %s231, [#allocation7], 64, 64, 4
        $region20: #{tpu_custom_call.1} parent=11 // pred_fallthru
          _
        // Predicated region
        $region21: #{tpu_custom_call.1} parent=11 // pred_check
          %p237 = pneg %p107
        $region22: #{tpu_custom_call.1} parent=11 // pred_check_branch
          %239 = sbr.rel (%p237) target = $region24
        $region23: #{tpu_custom_call.1} parent=11 // pred_region
          _
        $region24: #{tpu_custom_call.1} parent=11 // pred_fallthru
          _
        // Predicated region
        $region25: #{tpu_custom_call.1} parent=11 // pred_check
          %p240 = pneg %p128
        $region26: #{tpu_custom_call.1} parent=11 // pred_check_branch
          %242 = sbr.rel (%p240) target = $region28
        $region27: #{tpu_custom_call.1} parent=11 // pred_region
          _
        $region28: #{tpu_custom_call.1} parent=11 // pred_fallthru
          _
        // Predicated region
        $region29: #{tpu_custom_call.1} parent=11 // pred_check
          %p243 = pneg %p149
        $region30: #{tpu_custom_call.1} parent=11 // pred_check_branch
          %245 = sbr.rel (%p243) target = $region32
        $region31: #{tpu_custom_call.1} parent=11 // pred_region
          _
        $region32: #{tpu_custom_call.1} parent=11 // pred_fallthru
          _
        // Predicated region
        $region33: #{tpu_custom_call.1} parent=11 // pred_check
          %p246 = pneg %p170
        $region34: #{tpu_custom_call.1} parent=11 // pred_check_branch
          %248 = sbr.rel (%p246) target = $region36
        $region35: #{tpu_custom_call.1} parent=11 // pred_region
          _
        $region36: #{tpu_custom_call.1} parent=11 // pred_fallthru
          _
      $region12: #{tpu_custom_call.1} parent=5 // pred_fallthru
        _
      %p249 = scmp.lt.s32.totalorder %s18, 2
      // Predicated region
      $region37: #{tpu_custom_call.1} parent=5 // pred_check
        %p250 = pneg %p249
      $region38: #{tpu_custom_call.1} parent=5 // pred_check_branch
        %252 = sbr.rel (%p250) target = $region40
      $region39: #{tpu_custom_call.1} parent=5 // pred_region
        // Predicated region
        $region41: #{tpu_custom_call.1} parent=39 // pred_check
          %p253 = pneg %p38
        $region42: #{tpu_custom_call.1} parent=39 // pred_check_branch
          %255 = sbr.rel (%p253) target = $region44
        $region43: #{tpu_custom_call.1} parent=39 // pred_region
          %p256 = scmp.lt.s32.totalorder %s18, 1
          %s257 = scalar_select %p256, %s18, 1
          %s258 = smul.addr %s257, 3
          %s259 = smul.addr %s258, 4
          %s260 = scalar_lea.vmem %s0, %s259
        $region44: #{tpu_custom_call.1} parent=39 // pred_fallthru
          _
      $region40: #{tpu_custom_call.1} parent=5 // pred_fallthru
        _
      %p261 = scmp.le.s32.totalorder 1, %s18
      %p262 = scmp.lt.s32.totalorder %s18, 3
      %p263 = pnand %p261, %p262
      %p264 = pneg %p263
      // Predicated region
      $region45: #{tpu_custom_call.1} parent=5 // pred_check
        _
      $region46: #{tpu_custom_call.1} parent=5 // pred_check_branch
        %266 = sbr.rel (%p263) target = $region48
      $region47: #{tpu_custom_call.1} parent=5 // pred_region
        %s267 = ssub.s32 %s18, 1
        // Predicated region
        $region49: #{tpu_custom_call.1} parent=47 // pred_check
          %p268 = pneg %p65
        $region50: #{tpu_custom_call.1} parent=47 // pred_check_branch
          %270 = sbr.rel (%p268) target = $region52
        $region51: #{tpu_custom_call.1} parent=47 // pred_region
          %271 = dma.done [#allocation4], 1536
        $region52: #{tpu_custom_call.1} parent=47 // pred_fallthru
          _
        // Predicated region
        $region53: #{tpu_custom_call.1} parent=47 // pred_check
          %p272 = pneg %p86
        $region54: #{tpu_custom_call.1} parent=47 // pred_check_branch
          %274 = sbr.rel (%p272) target = $region56
        $region55: #{tpu_custom_call.1} parent=47 // pred_region
          %275 = dma.done [#allocation7], 1536
        $region56: #{tpu_custom_call.1} parent=47 // pred_fallthru
          _
        %p276 = scmp.lt.s32.totalorder %s23, 1
        %s277 = scalar_select %p276, %s23, 1
        %s278 = smul.addr %s277, 3
        %s279 = smul.addr %s278, 4
        %s280 = scalar_lea.vmem %s0, %s279
        %p281 = pneg %p44
        %p282 = pneg %p41
        %p283 = pneg %p65
        %p284 = pneg %p62
        %p285 = pneg %p86
        %p286 = pneg %p83
        %p287 = pneg %p107
        %p288 = pneg %p104
        %p289 = pneg %p128
        %p290 = pneg %p125
        %p291 = pneg %p149
        %p292 = pneg %p146
        %p293 = pneg %p170
        %p294 = pneg %p167
        %p295 = pneg %p196
        %p296 = pneg %p193
        %s297 = sand.u32 %s183, 1
        %s298 = scalar_lea.sflag [#allocation5], %s297
        %s299 = sand.u32 %s183, 1
        %s300 = smul.addr %s299, 16
        %s301 = scalar_lea.vmem [#allocation8], %s300
        %p302 = scmp.lt.s32.totalorder %s23, 1
        %s303 = scalar_select %p302, %s23, 1
        %s304 = smul.addr %s303, 3
        %s305 = smul.addr %s304, 4
        %s306 = scalar_lea.vmem %s0, %s305
        %v308 = vld [vmem:[%s306] sm:$0xf]
        %v309 = vld [vmem:[%s306 + $0x4] sm:$0xf]
        %v310 = vld [vmem:[%s306 + $0x8] sm:$0x1]
        %v311 = vld [vmem:[#allocation3] sm:$0xf]
        %v312 = vld [vmem:[#allocation3 + $0x4] sm:$0xf]
        %v313 = vld [vmem:[#allocation3 + $0x8] sm:$0xf]
        %v314 = vld [vmem:[#allocation3 + $0xc] sm:$0xf]
        %v315 = vld [vmem:[#allocation3 + $0x10] sm:$0xf]
        %v316 = vld [vmem:[#allocation3 + $0x14] sm:$0xf]
        %v317 = vld [vmem:[#allocation3 + $0x18] sm:$0xf]
        %v318 = vld [vmem:[#allocation3 + $0x1c] sm:$0xf]
        %s319 = scalar_lea.vmem [#allocation3], 32
        %v320 = vld [vmem:[%s319] sm:$0xf]
        %v321 = vld [vmem:[%s319 + $0x4] sm:$0xf]
        %v322 = vld [vmem:[%s319 + $0x8] sm:$0xf]
        %v323 = vld [vmem:[%s319 + $0xc] sm:$0xf]
        %v324 = vld [vmem:[%s319 + $0x10] sm:$0xf]
        %v325 = vld [vmem:[%s319 + $0x14] sm:$0xf]
        %v326 = vld [vmem:[%s319 + $0x18] sm:$0xf]
        %v327 = vld [vmem:[%s319 + $0x1c] sm:$0xf]
        %v331 = vunpack.c.l.b16 %v308
        %v332 = vunpack.c.l.b16 %v309
        %v333 = vunpack.c.l.b16 %v310
        %v334 = vpack.c.b16 %v332, %v331
        %v335 = vpack.c.b16 %v333, %v333
        %vm336 = vsmask.f32 7424
        %v338 = vshrl.u32 %v334, 16
        %v340 = vshll.u32 %v334, 16
        %v342 = vrot.slane %v340, 1
        %v343 = vor.u32 %v338, %v342
        %v345 = vshll.u32 %v335, 16
        %v347 = vrot.slane %v345, 1
        %v348 = vsel %vm336, %v343, %v347
        %v357 = vunpack.c.l.b16 %v320
        %v358 = vunpack.c.l.b16 %v321
        %v359 = vunpack.c.l.b16 %v322
        %v360 = vunpack.c.l.b16 %v323
        %v361 = vunpack.c.l.b16 %v324
        %v362 = vunpack.c.l.b16 %v325
        %v363 = vunpack.c.l.b16 %v326
        %v364 = vunpack.c.l.b16 %v327
        %v365 = vpack.c.b16 %v358, %v357
        %v366 = vpack.c.b16 %v360, %v359
        %v367 = vpack.c.b16 %v362, %v361
        %v368 = vpack.c.b16 %v364, %v363
        %vm373 = vcmask 523264
        %v375 = vsel %vm373, %v348, 0
        %377 = vmatprep.subr.bf16.mxu0 0
        %378 = vmatpush1.bf16.msra.mxu0 %v365
        %379 = vmatprep.subr.bf16.mxu0 0
        %380 = vmatpush1.bf16.msra.mxu0 %v366
        %381 = vmatprep.subr.bf16.mxu0 0
        %382 = vmatpush1.bf16.msra.mxu0 %v367
        %383 = vmatprep.subr.bf16.mxu0 0
        %384 = vmatpush1.bf16.msra.mxu0 %v368
        %385 = vmatprep.subr.bf16.mxu0 0
        %386 = vmatpush1.bf16.msra.mxu0 0
        %387 = vmatprep.subr.bf16.mxu0 0
        %388 = vmatpush1.bf16.msra.mxu0 0
        %389 = vmatprep.subr.bf16.mxu0 0
        %390 = vmatpush1.bf16.msra.mxu0 0
        %391 = vmatprep.subr.bf16.mxu0 0
        %392 = vmatpush1.bf16.msra.mxu0 0
        %393 = vmatprep.subr.bf16.mxu0 0
        %394 = vmatpush1.bf16.msra.mxu0 0
        %395 = vmatprep.subr.bf16.mxu0 0
        %396 = vmatpush1.bf16.msra.mxu0 0
        %397 = vmatprep.subr.bf16.mxu0 0
        %398 = vmatpush1.bf16.msra.mxu0 0
        %399 = vmatprep.subr.bf16.mxu0 0
        %400 = vmatpush1.bf16.msra.mxu0 0
        %401 = vmatprep.subr.bf16.mxu0 0
        %402 = vmatpush1.bf16.msra.mxu0 0
        %403 = vmatprep.subr.bf16.mxu0 0
        %404 = vmatpush1.bf16.msra.mxu0 0
        %405 = vmatprep.subr.bf16.mxu0 0
        %406 = vmatpush1.bf16.msra.mxu0 0
        %407 = vmatprep.subr.bf16.mxu0 0
        %408 = vmatpush1.bf16.msra.mxu0 0
        %409 = vmatprep.mubr.bf16.mxu0 0
        %410 = vmatmul.mubr.bf16.gmra.mrb[0].mxu0 %v375
        %v411 = vpop.f32.mrb[0].mxu0
        %v412 = vadd.f32 0.0, %v411
        %v413 = vpop.f32.mrb[0].mxu0
        %v414 = vpop.f32.mrb[0].mxu0
        %v415 = vadd.f32 0.0, %v414
        %v416 = vpop.f32.mrb[0].mxu0
        %417 = vdwg.mxu0
        %v426 = vunpack.c.l.b16 %v311
        %v427 = vunpack.c.l.b16 %v312
        %v428 = vunpack.c.l.b16 %v313
        %v429 = vunpack.c.l.b16 %v314
        %v430 = vunpack.c.l.b16 %v315
        %v431 = vunpack.c.l.b16 %v316
        %v432 = vunpack.c.l.b16 %v317
        %v433 = vunpack.c.l.b16 %v318
        %v434 = vpack.c.b16 %v427, %v426
        %v435 = vpack.c.b16 %v429, %v428
        %v436 = vpack.c.b16 %v431, %v430
        %v437 = vpack.c.b16 %v433, %v432
        %v442 = vsel %vm373, %v334, 0
        %444 = vmatprep.subr.bf16.mxu0 0
        %445 = vmatpush1.bf16.msra.mxu0 %v434
        %446 = vmatprep.subr.bf16.mxu0 0
        %447 = vmatpush1.bf16.msra.mxu0 %v435
        %448 = vmatprep.subr.bf16.mxu0 0
        %449 = vmatpush1.bf16.msra.mxu0 %v436
        %450 = vmatprep.subr.bf16.mxu0 0
        %451 = vmatpush1.bf16.msra.mxu0 %v437
        %452 = vmatprep.subr.bf16.mxu0 0
        %453 = vmatpush1.bf16.msra.mxu0 0
        %454 = vmatprep.subr.bf16.mxu0 0
        %455 = vmatpush1.bf16.msra.mxu0 0
        %456 = vmatprep.subr.bf16.mxu0 0
        %457 = vmatpush1.bf16.msra.mxu0 0
        %458 = vmatprep.subr.bf16.mxu0 0
        %459 = vmatpush1.bf16.msra.mxu0 0
        %460 = vmatprep.subr.bf16.mxu0 0
        %461 = vmatpush1.bf16.msra.mxu0 0
        %462 = vmatprep.subr.bf16.mxu0 0
        %463 = vmatpush1.bf16.msra.mxu0 0
        %464 = vmatprep.subr.bf16.mxu0 0
        %465 = vmatpush1.bf16.msra.mxu0 0
        %466 = vmatprep.subr.bf16.mxu0 0
        %467 = vmatpush1.bf16.msra.mxu0 0
        %468 = vmatprep.subr.bf16.mxu0 0
        %469 = vmatpush1.bf16.msra.mxu0 0
        %470 = vmatprep.subr.bf16.mxu0 0
        %471 = vmatpush1.bf16.msra.mxu0 0
        %472 = vmatprep.subr.bf16.mxu0 0
        %473 = vmatpush1.bf16.msra.mxu0 0
        %474 = vmatprep.subr.bf16.mxu0 0
        %475 = vmatpush1.bf16.msra.mxu0 0
        %476 = vmatprep.mubr.bf16.mxu0 0
        %477 = vmatmul.mubr.bf16.gmra.mrb[0].mxu0 %v442
        %v478 = vpop.f32.mrb[0].mxu0
        %v479 = vadd.f32 %v412, %v478
        %v480 = vpop.f32.mrb[0].mxu0
        %v481 = vpop.f32.mrb[0].mxu0
        %v482 = vadd.f32 %v415, %v481
        %v483 = vpop.f32.mrb[0].mxu0
        %484 = vdwg.mxu0
        %s485 = scalar_lea.vmem [#allocation3], 64
        %v486 = vld [vmem:[%s485] sm:$0xf]
        %v487 = vld [vmem:[%s485 + $0x4] sm:$0xf]
        %v488 = vld [vmem:[%s485 + $0x8] sm:$0xf]
        %v489 = vld [vmem:[%s485 + $0xc] sm:$0xf]
        %v490 = vld [vmem:[%s485 + $0x10] sm:$0xf]
        %v491 = vld [vmem:[%s485 + $0x14] sm:$0xf]
        %v492 = vld [vmem:[%s485 + $0x18] sm:$0xf]
        %v493 = vld [vmem:[%s485 + $0x1c] sm:$0xf]
        %vm494 = vcmask 1046528
        %v495 = vrot.slane %v334, 1
        %v496 = vrot.slane %v335, 1
        %v497 = vsel %vm494, %v495, %v496
        %v506 = vunpack.c.l.b16 %v486
        %v507 = vunpack.c.l.b16 %v487
        %v508 = vunpack.c.l.b16 %v488
        %v509 = vunpack.c.l.b16 %v489
        %v510 = vunpack.c.l.b16 %v490
        %v511 = vunpack.c.l.b16 %v491
        %v512 = vunpack.c.l.b16 %v492
        %v513 = vunpack.c.l.b16 %v493
        %v514 = vpack.c.b16 %v507, %v506
        %v515 = vpack.c.b16 %v509, %v508
        %v516 = vpack.c.b16 %v511, %v510
        %v517 = vpack.c.b16 %v513, %v512
        %v523 = vsel %vm373, %v497, 0
        %525 = vmatprep.subr.bf16.mxu0 0
        %526 = vmatpush1.bf16.msra.mxu0 %v514
        %527 = vmatprep.subr.bf16.mxu0 0
        %528 = vmatpush1.bf16.msra.mxu0 %v515
        %529 = vmatprep.subr.bf16.mxu0 0
        %530 = vmatpush1.bf16.msra.mxu0 %v516
        %531 = vmatprep.subr.bf16.mxu0 0
        %532 = vmatpush1.bf16.msra.mxu0 %v517
        %533 = vmatprep.subr.bf16.mxu0 0
        %534 = vmatpush1.bf16.msra.mxu0 0
        %535 = vmatprep.subr.bf16.mxu0 0
        %536 = vmatpush1.bf16.msra.mxu0 0
        %537 = vmatprep.subr.bf16.mxu0 0
        %538 = vmatpush1.bf16.msra.mxu0 0
        %539 = vmatprep.subr.bf16.mxu0 0
        %540 = vmatpush1.bf16.msra.mxu0 0
        %541 = vmatprep.subr.bf16.mxu0 0
        %542 = vmatpush1.bf16.msra.mxu0 0
        %543 = vmatprep.subr.bf16.mxu0 0
        %544 = vmatpush1.bf16.msra.mxu0 0
        %545 = vmatprep.subr.bf16.mxu0 0
        %546 = vmatpush1.bf16.msra.mxu0 0
        %547 = vmatprep.subr.bf16.mxu0 0
        %548 = vmatpush1.bf16.msra.mxu0 0
        %549 = vmatprep.subr.bf16.mxu0 0
        %550 = vmatpush1.bf16.msra.mxu0 0
        %551 = vmatprep.subr.bf16.mxu0 0
        %552 = vmatpush1.bf16.msra.mxu0 0
        %553 = vmatprep.subr.bf16.mxu0 0
        %554 = vmatpush1.bf16.msra.mxu0 0
        %555 = vmatprep.subr.bf16.mxu0 0
        %556 = vmatpush1.bf16.msra.mxu0 0
        %557 = vmatprep.mubr.bf16.mxu0 0
        %558 = vmatmul.mubr.bf16.gmra.mrb[0].mxu0 %v523
        %v559 = vpop.f32.mrb[0].mxu0
        %v560 = vadd.f32 0.0, %v559
        %v561 = vpop.f32.mrb[0].mxu0
        %v562 = vpop.f32.mrb[0].mxu0
        %v563 = vadd.f32 0.0, %v562
        %v564 = vpop.f32.mrb[0].mxu0
        %565 = vdwg.mxu0
        %v566 = vadd.f32 %v479, %v560
        %v567 = vadd.f32 %v482, %v563
        %vm568 = vcmask 516096
        %569 = vst.msk [vmem:[#allocation2] sm:$0x1] %vm568, 0.0
        %570 = vst.msk [vmem:[#allocation2 + $0x11] sm:$0x1] %vm568, 0.0
        %v571 = vld [vmem:[%s3] sm:$0x1]
        %v573 = vlaneseq
        %v574 = vshrl.u32 %v573, 7
        %v575 = vsub.s32 0, %v574
        %v576 = vrot.slane %v571, %v575
        %v578 = vmul.f32 %v566, %v576
        %v579 = vmul.f32 %v567, %v576
        %v580 = vld [vmem:[%s4] sm:$0x1]
        %v582 = vlaneseq
        %v583 = vshrl.u32 %v582, 7
        %v584 = vsub.s32 0, %v583
        %v585 = vrot.slane %v580, %v584
        %v587 = vadd.f32 %v578, %v585
        %v588 = vadd.f32 %v579, %v585
        %v589 = vmax.f32 %v587, 0.0
        %v590 = vmax.f32 %v588, 0.0
        %591 = vst.msk [vmem:[#allocation2 + $0x1] sm:$0xff] %vm373, %v589
        %592 = vst.msk [vmem:[#allocation2 + $0x9] sm:$0xff] %vm373, %v590
        %v593 = vld [vmem:[#allocation2] sm:$0xff]
        %v594 = vld [vmem:[#allocation2 + $0x8] sm:$0xff]
        %v595 = vld [vmem:[#allocation2 + $0x10] sm:$0x3]
        %v596 = vpack.c.bf16 %v594, %v593
        %v597 = vpack.c.bf16 %v595, %v595
        %v598 = vld [vmem:[#allocation6] sm:$0xf]
        %v599 = vld [vmem:[#allocation6 + $0x4] sm:$0xf]
        %v600 = vld [vmem:[#allocation6 + $0x8] sm:$0xf]
        %v601 = vld [vmem:[#allocation6 + $0xc] sm:$0xf]
        %v602 = vld [vmem:[#allocation6 + $0x10] sm:$0xf]
        %v603 = vld [vmem:[#allocation6 + $0x14] sm:$0xf]
        %v604 = vld [vmem:[#allocation6 + $0x18] sm:$0xf]
        %v605 = vld [vmem:[#allocation6 + $0x1c] sm:$0xf]
        %s606 = scalar_lea.vmem [#allocation6], 32
        %v607 = vld [vmem:[%s606] sm:$0xf]
        %v608 = vld [vmem:[%s606 + $0x4] sm:$0xf]
        %v609 = vld [vmem:[%s606 + $0x8] sm:$0xf]
        %v610 = vld [vmem:[%s606 + $0xc] sm:$0xf]
        %v611 = vld [vmem:[%s606 + $0x10] sm:$0xf]
        %v612 = vld [vmem:[%s606 + $0x14] sm:$0xf]
        %v613 = vld [vmem:[%s606 + $0x18] sm:$0xf]
        %v614 = vld [vmem:[%s606 + $0x1c] sm:$0xf]
        %v616 = vshrl.u32 %v596, 16
        %v618 = vshll.u32 %v596, 16
        %v620 = vrot.slane %v618, 1
        %v621 = vor.u32 %v616, %v620
        %v623 = vshll.u32 %v597, 16
        %v625 = vrot.slane %v623, 1
        %v626 = vsel %vm336, %v621, %v625
        %v635 = vunpack.c.l.b16 %v607
        %v636 = vunpack.c.l.b16 %v608
        %v637 = vunpack.c.l.b16 %v609
        %v638 = vunpack.c.l.b16 %v610
        %v639 = vunpack.c.l.b16 %v611
        %v640 = vunpack.c.l.b16 %v612
        %v641 = vunpack.c.l.b16 %v613
        %v642 = vunpack.c.l.b16 %v614
        %v643 = vpack.c.b16 %v636, %v635
        %v644 = vpack.c.b16 %v638, %v637
        %v645 = vpack.c.b16 %v640, %v639
        %v646 = vpack.c.b16 %v642, %v641
        %v652 = vsel %vm373, %v626, 0
        %654 = vmatprep.subr.bf16.mxu0 0
        %655 = vmatpush1.bf16.msra.mxu0 %v643
        %656 = vmatprep.subr.bf16.mxu0 0
        %657 = vmatpush1.bf16.msra.mxu0 %v644
        %658 = vmatprep.subr.bf16.mxu0 0
        %659 = vmatpush1.bf16.msra.mxu0 %v645
        %660 = vmatprep.subr.bf16.mxu0 0
        %661 = vmatpush1.bf16.msra.mxu0 %v646
        %662 = vmatprep.subr.bf16.mxu0 0
        %663 = vmatpush1.bf16.msra.mxu0 0
        %664 = vmatprep.subr.bf16.mxu0 0
        %665 = vmatpush1.bf16.msra.mxu0 0
        %666 = vmatprep.subr.bf16.mxu0 0
        %667 = vmatpush1.bf16.msra.mxu0 0
        %668 = vmatprep.subr.bf16.mxu0 0
        %669 = vmatpush1.bf16.msra.mxu0 0
        %670 = vmatprep.subr.bf16.mxu0 0
        %671 = vmatpush1.bf16.msra.mxu0 0
        %672 = vmatprep.subr.bf16.mxu0 0
        %673 = vmatpush1.bf16.msra.mxu0 0
        %674 = vmatprep.subr.bf16.mxu0 0
        %675 = vmatpush1.bf16.msra.mxu0 0
        %676 = vmatprep.subr.bf16.mxu0 0
        %677 = vmatpush1.bf16.msra.mxu0 0
        %678 = vmatprep.subr.bf16.mxu0 0
        %679 = vmatpush1.bf16.msra.mxu0 0
        %680 = vmatprep.subr.bf16.mxu0 0
        %681 = vmatpush1.bf16.msra.mxu0 0
        %682 = vmatprep.subr.bf16.mxu0 0
        %683 = vmatpush1.bf16.msra.mxu0 0
        %684 = vmatprep.subr.bf16.mxu0 0
        %685 = vmatpush1.bf16.msra.mxu0 0
        %686 = vmatprep.mubr.bf16.mxu0 0
        %687 = vmatmul.mubr.bf16.gmra.mrb[0].mxu0 %v652
        %v688 = vpop.f32.mrb[0].mxu0
        %v689 = vadd.f32 0.0, %v688
        %v690 = vpop.f32.mrb[0].mxu0
        %v691 = vpop.f32.mrb[0].mxu0
        %v692 = vadd.f32 0.0, %v691
        %v693 = vpop.f32.mrb[0].mxu0
        %694 = vdwg.mxu0
        %v703 = vunpack.c.l.b16 %v598
        %v704 = vunpack.c.l.b16 %v599
        %v705 = vunpack.c.l.b16 %v600
        %v706 = vunpack.c.l.b16 %v601
        %v707 = vunpack.c.l.b16 %v602
        %v708 = vunpack.c.l.b16 %v603
        %v709 = vunpack.c.l.b16 %v604
        %v710 = vunpack.c.l.b16 %v605
        %v711 = vpack.c.b16 %v704, %v703
        %v712 = vpack.c.b16 %v706, %v705
        %v713 = vpack.c.b16 %v708, %v707
        %v714 = vpack.c.b16 %v710, %v709
        %v719 = vsel %vm373, %v596, 0
        %721 = vmatprep.subr.bf16.mxu0 0
        %722 = vmatpush1.bf16.msra.mxu0 %v711
        %723 = vmatprep.subr.bf16.mxu0 0
        %724 = vmatpush1.bf16.msra.mxu0 %v712
        %725 = vmatprep.subr.bf16.mxu0 0
        %726 = vmatpush1.bf16.msra.mxu0 %v713
        %727 = vmatprep.subr.bf16.mxu0 0
        %728 = vmatpush1.bf16.msra.mxu0 %v714
        %729 = vmatprep.subr.bf16.mxu0 0
        %730 = vmatpush1.bf16.msra.mxu0 0
        %731 = vmatprep.subr.bf16.mxu0 0
        %732 = vmatpush1.bf16.msra.mxu0 0
        %733 = vmatprep.subr.bf16.mxu0 0
        %734 = vmatpush1.bf16.msra.mxu0 0
        %735 = vmatprep.subr.bf16.mxu0 0
        %736 = vmatpush1.bf16.msra.mxu0 0
        %737 = vmatprep.subr.bf16.mxu0 0
        %738 = vmatpush1.bf16.msra.mxu0 0
        %739 = vmatprep.subr.bf16.mxu0 0
        %740 = vmatpush1.bf16.msra.mxu0 0
        %741 = vmatprep.subr.bf16.mxu0 0
        %742 = vmatpush1.bf16.msra.mxu0 0
        %743 = vmatprep.subr.bf16.mxu0 0
        %744 = vmatpush1.bf16.msra.mxu0 0
        %745 = vmatprep.subr.bf16.mxu0 0
        %746 = vmatpush1.bf16.msra.mxu0 0
        %747 = vmatprep.subr.bf16.mxu0 0
        %748 = vmatpush1.bf16.msra.mxu0 0
        %749 = vmatprep.subr.bf16.mxu0 0
        %750 = vmatpush1.bf16.msra.mxu0 0
        %751 = vmatprep.subr.bf16.mxu0 0
        %752 = vmatpush1.bf16.msra.mxu0 0
        %753 = vmatprep.mubr.bf16.mxu0 0
        %754 = vmatmul.mubr.bf16.gmra.mrb[0].mxu0 %v719
        %v755 = vpop.f32.mrb[0].mxu0
        %v756 = vadd.f32 %v689, %v755
        %v757 = vpop.f32.mrb[0].mxu0
        %v758 = vpop.f32.mrb[0].mxu0
        %v759 = vadd.f32 %v692, %v758
        %v760 = vpop.f32.mrb[0].mxu0
        %761 = vdwg.mxu0
        %s762 = scalar_lea.vmem [#allocation6], 64
        %v763 = vld [vmem:[%s762] sm:$0xf]
        %v764 = vld [vmem:[%s762 + $0x4] sm:$0xf]
        %v765 = vld [vmem:[%s762 + $0x8] sm:$0xf]
        %v766 = vld [vmem:[%s762 + $0xc] sm:$0xf]
        %v767 = vld [vmem:[%s762 + $0x10] sm:$0xf]
        %v768 = vld [vmem:[%s762 + $0x14] sm:$0xf]
        %v769 = vld [vmem:[%s762 + $0x18] sm:$0xf]
        %v770 = vld [vmem:[%s762 + $0x1c] sm:$0xf]
        %v773 = vrot.slane %v596, 1
        %v774 = vrot.slane %v597, 1
        %v775 = vsel %vm494, %v773, %v774
        %v784 = vunpack.c.l.b16 %v763
        %v785 = vunpack.c.l.b16 %v764
        %v786 = vunpack.c.l.b16 %v765
        %v787 = vunpack.c.l.b16 %v766
        %v788 = vunpack.c.l.b16 %v767
        %v789 = vunpack.c.l.b16 %v768
        %v790 = vunpack.c.l.b16 %v769
        %v791 = vunpack.c.l.b16 %v770
        %v792 = vpack.c.b16 %v785, %v784
        %v793 = vpack.c.b16 %v787, %v786
        %v794 = vpack.c.b16 %v789, %v788
        %v795 = vpack.c.b16 %v791, %v790
        %v801 = vsel %vm373, %v775, 0
        %803 = vmatprep.subr.bf16.mxu0 0
        %804 = vmatpush1.bf16.msra.mxu0 %v792
        %805 = vmatprep.subr.bf16.mxu0 0
        %806 = vmatpush1.bf16.msra.mxu0 %v793
        %807 = vmatprep.subr.bf16.mxu0 0
        %808 = vmatpush1.bf16.msra.mxu0 %v794
        %809 = vmatprep.subr.bf16.mxu0 0
        %810 = vmatpush1.bf16.msra.mxu0 %v795
        %811 = vmatprep.subr.bf16.mxu0 0
        %812 = vmatpush1.bf16.msra.mxu0 0
        %813 = vmatprep.subr.bf16.mxu0 0
        %814 = vmatpush1.bf16.msra.mxu0 0
        %815 = vmatprep.subr.bf16.mxu0 0
        %816 = vmatpush1.bf16.msra.mxu0 0
        %817 = vmatprep.subr.bf16.mxu0 0
        %818 = vmatpush1.bf16.msra.mxu0 0
        %819 = vmatprep.subr.bf16.mxu0 0
        %820 = vmatpush1.bf16.msra.mxu0 0
        %821 = vmatprep.subr.bf16.mxu0 0
        %822 = vmatpush1.bf16.msra.mxu0 0
        %823 = vmatprep.subr.bf16.mxu0 0
        %824 = vmatpush1.bf16.msra.mxu0 0
        %825 = vmatprep.subr.bf16.mxu0 0
        %826 = vmatpush1.bf16.msra.mxu0 0
        %827 = vmatprep.subr.bf16.mxu0 0
        %828 = vmatpush1.bf16.msra.mxu0 0
        %829 = vmatprep.subr.bf16.mxu0 0
        %830 = vmatpush1.bf16.msra.mxu0 0
        %831 = vmatprep.subr.bf16.mxu0 0
        %832 = vmatpush1.bf16.msra.mxu0 0
        %833 = vmatprep.subr.bf16.mxu0 0
        %834 = vmatpush1.bf16.msra.mxu0 0
        %835 = vmatprep.mubr.bf16.mxu0 0
        %836 = vmatmul.mubr.bf16.gmra.mrb[0].mxu0 %v801
        %v837 = vpop.f32.mrb[0].mxu0
        %v838 = vadd.f32 0.0, %v837
        %v839 = vpop.f32.mrb[0].mxu0
        %v840 = vpop.f32.mrb[0].mxu0
        %v841 = vadd.f32 0.0, %v840
        %v842 = vpop.f32.mrb[0].mxu0
        %843 = vdwg.mxu0
        %v844 = vadd.f32 %v756, %v838
        %v845 = vadd.f32 %v759, %v841
        %v846 = vunpack.c.l.bf16 %v308
        %v847 = vunpack.c.l.bf16 %v309
        %v848 = vunpack.c.l.bf16 %v310
        %v849 = vld [vmem:[%s5] sm:$0x1]
        %v851 = vlaneseq
        %v852 = vshrl.u32 %v851, 7
        %v853 = vsub.s32 0, %v852
        %v854 = vrot.slane %v849, %v853
        %v856 = vmul.f32 %v844, %v854
        %v857 = vmul.f32 %v845, %v854
        %v858 = vld [vmem:[%s6] sm:$0x1]
        %v860 = vlaneseq
        %v861 = vshrl.u32 %v860, 7
        %v862 = vsub.s32 0, %v861
        %v863 = vrot.slane %v858, %v862
        %v865 = vadd.f32 %v856, %v863
        %v866 = vadd.f32 %v857, %v863
        %vm870 = vcmask 1046528
        %v871 = vrot.slane %v846, 1
        %v872 = vrot.slane %v847, 1
        %v873 = vsel %vm870, %v871, %v872
        %v874 = vrot.slane %v848, 1
        %v875 = vsel %vm870, %v872, %v874
        %v878 = vadd.f32 %v865, %v873
        %v879 = vadd.f32 %v866, %v875
        %v880 = vmax.f32 %v878, 0.0
        %v881 = vmax.f32 %v879, 0.0
        %882 = vst.msk [vmem:[%s301] sm:$0xff] %vm373, %v880
        %883 = vst.msk [vmem:[%s301 + $0x8] sm:$0xff] %vm373, %v881
        %s884 = sand.u32 %s183, 1
        %s885 = scalar_lea.sflag [#allocation5], %s884
        %s886 = sand.u32 %s183, 1
        %s887 = smul.addr %s886, 16
        %s888 = scalar_lea.vmem [#allocation8], %s887
        // Predicated region
        $region57: #{tpu_custom_call.1} parent=47 // pred_check
          %p889 = pneg %p193
        $region58: #{tpu_custom_call.1} parent=47 // pred_check_branch
          %891 = sbr.rel (%p889) target = $region60
        $region59: #{tpu_custom_call.1} parent=47 // pred_region
          %s893 = ssub.s32 256, 256
          %894 = vsyncadd %s885, %s893
          %s895 = smul.addr %s23, 2
          %s896 = smul.addr %s895, 128
          %s897 = scalar_lea.hbm %s7, %s896
          %s898 = sshll.u32 %s888, 4
          %s899 = int_to_ptr.vmem [resolvable:$true] %s898
          %904 = dma.vmem_to_hbm [thread:$0]  %s899, 256, %s897, %s885, 128, 128, 8
        $region60: #{tpu_custom_call.1} parent=47 // pred_fallthru
          _
      $region48: #{tpu_custom_call.1} parent=5 // pred_fallthru
        _
      %p905 = scmp.le.s32.totalorder 2, %s18
      // Predicated region
      $region61: #{tpu_custom_call.1} parent=5 // pred_check
        %p906 = pneg %p905
      $region62: #{tpu_custom_call.1} parent=5 // pred_check_branch
        %908 = sbr.rel (%p906) target = $region64
      $region63: #{tpu_custom_call.1} parent=5 // pred_region
        %s909 = ssub.s32 %s18, 2
        // Predicated region
        $region65: #{tpu_custom_call.1} parent=63 // pred_check
          %p910 = pneg %p199
        $region66: #{tpu_custom_call.1} parent=63 // pred_check_branch
          %912 = sbr.rel (%p910) target = $region68
        $region67: #{tpu_custom_call.1} parent=63 // pred_region
          %s913 = sand.u32 %s184, 1
          %s914 = scalar_lea.sflag [#allocation5], %s913
          %s915 = sand.u32 %s184, 1
          %s916 = smul.addr %s915, 16
          %s917 = scalar_lea.vmem [#allocation8], %s916
          %918 = dma.done %s914, 256
        $region68: #{tpu_custom_call.1} parent=63 // pred_fallthru
          _
      $region64: #{tpu_custom_call.1} parent=5 // pred_fallthru
        _
    $region6: #{tpu_custom_call.1} parent=1 // loop_footer
      %s22 = sadd.s32 1, %s18
    $region7: #{tpu_custom_call.1} parent=1 // loop_footer_branch
      %17 = sbr.rel target = $region3
    $region8: #{tpu_custom_call.1} parent=1 // loop_exit
      _
    %919 = vsyncpa [#allocation4], 1
    %s920 = scalar_lea.sflag [#allocation4], 1
    %921 = vsyncpa %s920, 1
    %922 = vsyncpa [#allocation7], 1
    %923 = vsyncpa [#allocation5], 1
    %s924 = scalar_lea.sflag [#allocation5], 1
    %925 = vsyncpa %s924, 1

</llo_original>
